<compile_context>
chip_gen: v7x
topology: tpu7x:2x2x1
jax: 0.10.0
libtpu: 0.0.40
codegen_flags: <defaults>
</compile_context>

<pallas_src>
import functools
import math

import jax
import jax.numpy as jnp
from jax.experimental import pallas as pl
from jax.experimental.pallas import tpu as pltpu

_HALF_LOG_2PI = 0.9189385332046727  # 0.5 * log(2*pi)


def _lgamma_digamma(x):
    """(log Gamma(x), digamma(x)) for x > 0, fully elementwise.

    Shift the argument by 4 (recurrence) and evaluate Stirling / asymptotic series at
    x+4 >= 4 (truncation error < 1e-7).  The four recurrence reciprocals of digamma are
    folded into one divide: 1/x+1/(x+1)+1/(x+2)+1/(x+3) = P'(x)/P(x), P(x)=x(x+1)(x+2)(x+3).
    Divides use the approximate EUP reciprocal; 1/P gets one Newton refinement because it
    feeds the dominant digamma recurrence term.
    """
    u = x * (x + 3.0)                 # x^2 + 3x
    prod = u * (u + 2.0)              # x(x+1)(x+2)(x+3)
    xs = x + 4.0
    inv = pl.reciprocal(xs, approx=True)
    inv2 = inv * inv
    ln_xs = jnp.log(xs)
    ln_prod = jnp.log(prod)
    inv_prod = pl.reciprocal(prod, approx=True)
    inv_prod = inv_prod * (2.0 - prod * inv_prod)       # one Newton step

    lgamma = ((xs - 0.5) * ln_xs - xs + _HALF_LOG_2PI
              + inv * (1.0 / 12.0 - inv2 * (1.0 / 360.0 - inv2 * (1.0 / 1260.0)))
              - ln_prod)
    digamma = (ln_xs - 0.5 * inv
               - inv2 * (1.0 / 12.0 - inv2 * (1.0 / 120.0 - inv2 * (1.0 / 252.0)))
               - (2.0 * u + 2.0) * (2.0 * x + 3.0) * inv_prod)
    return lgamma, digamma


def _evidential_mse_kernel(coef_ref, logits_ref, labels_ref, out_ref, *,
                           ln_b_uni, inner):
    coef = coef_ref[0, 0]
    c, tn = logits_ref.shape
    n_chunks = tn // inner
    c_f = float(c)

    # Strip-mine the lane axis of the (C, TILE_N) VMEM block so live intermediates
    # stay register-resident (big DMA block, bounded working set).
    @pl.loop(0, n_chunks)
    def _(ci):
        off = pl.multiple_of(ci * inner, inner)
        x = logits_ref[:, pl.ds(off, inner)].astype(jnp.float32)    # (C, inner)
        labels = labels_ref[:, pl.ds(off, inner)]                    # (1, inner) int32
        classes = jax.lax.broadcasted_iota(jnp.int32, (c, inner), 0)
        is_true = classes == labels                                   # one-hot mask

        # CELU(alpha=1) evidence; the where() safely discards the non-selected branch.
        evidence = jnp.where(x > 0.0, x, jnp.exp(x) - 1.0)
        alpha = evidence + 1.0

        # log-likelihood: err = 1 - 2*a_true/S + sa2/S^2 ; var = (1 - sa2/S^2)/(S+1)
        s = jnp.sum(alpha, axis=0, keepdims=True)                     # (1, inner)
        a_true = jnp.sum(jnp.where(is_true, alpha, 0.0), axis=0, keepdims=True)
        sa2 = jnp.sum(alpha * alpha, axis=0, keepdims=True)
        inv_s = 1.0 / s                       # per-row (not per-element): keep exact
        t = sa2 * (inv_s * inv_s)
        err = 1.0 - 2.0 * a_true * inv_s + t
        var = (1.0 - t) / (s + 1.0)
        loglikelihood = err + var                                     # (1, inner)

        # KL( Dir(kl_alpha) || Dir(1) ), kl_alpha = (alpha-1)*(1-y) + 1.
        km1 = jnp.where(is_true, 0.0, evidence)                       # kl_alpha - 1
        kl_alpha = jnp.maximum(km1 + 1.0, 1e-12)  # guard f32 underflow poles (NaN-free)
        s_a = s - a_true + 1.0                                        # sum(kl_alpha)
        lg_ka, dg_ka = _lgamma_digamma(kl_alpha)                      # (C, inner)
        lg_sa, dg_sa = _lgamma_digamma(s_a)                           # (1, inner)
        kl = (jnp.sum(km1 * dg_ka, axis=0, keepdims=True)
              - dg_sa * (s_a - c_f)                                   # sum(km1)=s_a-C
              + lg_sa - jnp.sum(lg_ka, axis=0, keepdims=True)
              + ln_b_uni)

        out_ref[:, pl.ds(off, inner)] = loglikelihood + coef * kl     # per-sample loss


def _round_up(v, m):
    return (v + m - 1) // m * m


def evidential_mse_loss(logits, target, *, batch_count=1, annealing_step=10000,
                        num_classes=10, tile_n=16384, inner=512,
                        logits_are_transposed=False, compute_input_dtype=None):
    """Pallas-TPU forward of EvidentialMSELoss.forward.  Returns a scalar f32 loss.

    logits_are_transposed=True: `logits` is already (num_classes, N) — skips the relayout.
    compute_input_dtype=jnp.bfloat16: halve transpose/DMA traffic (v5e); kernel upcasts.
    """
    if logits_are_transposed:
        c, n = logits.shape
    else:
        n, c = logits.shape
    assert c == num_classes

    if compute_input_dtype is not None:
        logits = logits.astype(compute_input_dtype)
    logits_t = logits if logits_are_transposed else logits.T          # (C, N)
    labels = target.astype(jnp.int32).reshape(1, n)

    # Lane-dense tiling: tile_n a multiple of 128, large enough to amortize the ~0.35us
    # per-grid-step overhead, small enough that the grid keeps >= ~4 steps.
    n_lanes = _round_up(n, 128)
    tile_n = max(128, min(tile_n, _round_up(pl.cdiv(n_lanes, 4), 128)))
    if tile_n > inner:
        tile_n = _round_up(tile_n, inner)      # exact in-kernel chunk loop
    else:
        inner = tile_n
    num_tiles = pl.cdiv(n, tile_n)             # final block may be partial (masked)

    # annealing_coef = min(1, batch_count / annealing_step)  (host-side module state)
    coef = jnp.full((1, 1), min(1.0, float(batch_count) / float(annealing_step)),
                    dtype=jnp.float32)
    ln_b_uni = -math.lgamma(float(num_classes))  # sum(lgamma(beta)) - lgamma(S_beta)

    kernel = functools.partial(_evidential_mse_kernel, ln_b_uni=ln_b_uni, inner=inner)

    per_sample = pl.pallas_call(
        kernel,
        out_shape=jax.ShapeDtypeStruct((1, n), jnp.float32),
        grid=(num_tiles,),
        in_specs=[
            pl.BlockSpec(memory_space=pltpu.MemorySpace.SMEM),         # coef (1,1)
            pl.BlockSpec((c, tile_n), lambda i: (0, i)),               # logits (C, TN)
            pl.BlockSpec((1, tile_n), lambda i: (0, i)),               # labels (1, TN)
        ],
        out_specs=pl.BlockSpec((1, tile_n), lambda i: (0, i)),         # per-sample loss
        compiler_params=pltpu.CompilerParams(
            dimension_semantics=("parallel",)),
    )(coef, logits_t, labels)

    return jnp.mean(per_sample)   # mean over the real batch (no padding in the output)


# ---------------------------------------------------------------------------
# Pure-JAX reference (for sanity check only).
# ---------------------------------------------------------------------------
def _reference_loss(logits, target, batch_count, annealing_step, num_classes):
    y = jax.nn.one_hot(target, num_classes, dtype=jnp.float32)
    evidence = jax.nn.celu(logits.astype(jnp.float32))
    alpha = evidence + 1.0
    s = jnp.sum(alpha, axis=1, keepdims=True)
    err = jnp.sum((y - alpha / s) ** 2, axis=1, keepdims=True)
    var = jnp.sum(alpha * (s - alpha) / (s * s * (s + 1.0)),
                  axis=1, keepdims=True)
    coef = min(1.0, float(batch_count) / float(annealing_step))
    ka = (alpha - 1.0) * (1.0 - y) + 1.0
    sa = jnp.sum(ka, axis=1, keepdims=True)
    gln = jax.scipy.special.gammaln
    dig = jax.scipy.special.digamma
    ln_b = gln(sa) - jnp.sum(gln(ka), axis=1, keepdims=True)
    ln_b_uni = -gln(jnp.float32(num_classes))
    kl = (jnp.sum((ka - 1.0) * (dig(ka) - dig(sa)), axis=1, keepdims=True)
          + ln_b + ln_b_uni)
    return jnp.mean(err + var + coef * kl)


if __name__ == "__main__":
    key = jax.random.PRNGKey(0)
    k1, k2, k3, k4, k5, k6 = jax.random.split(key, 6)
    NUM_CLASSES = 10

    # Case 1: tiny batch, first training step (annealing coef = 1e-4), single partial block.
    N1 = 16
    logits1 = jax.random.normal(k1, (N1, NUM_CLASSES), dtype=jnp.float32)
    target1 = jax.random.randint(k2, (N1,), 0, NUM_CLASSES, dtype=jnp.int32)
    loss1 = jax.block_until_ready(
        evidential_mse_loss(logits1, target1, batch_count=1,
                            annealing_step=10000, num_classes=NUM_CLASSES))
    ref1 = jax.block_until_ready(_reference_loss(logits1, target1, 1, 10000, NUM_CLASSES))

    # Case 2: batch not a lane multiple (partial final block, 2 grid steps) + large
    # annealing coefficient and wider logits (exercises the KL / lgamma / digamma path).
    N2 = 200
    logits2 = 2.0 * jax.random.normal(k3, (N2, NUM_CLASSES), dtype=jnp.float32)
    target2 = jax.random.randint(k4, (N2,), 0, NUM_CLASSES, dtype=jnp.int32)
    loss2 = jax.block_until_ready(
        evidential_mse_loss(logits2, target2, batch_count=5000,
                            annealing_step=10000, num_classes=NUM_CLASSES))
    ref2 = jax.block_until_ready(_reference_loss(logits2, target2, 5000, 10000, NUM_CLASSES))

    # Case 3: multi-tile grid with several in-kernel lane chunks and coef clamped to 1.
    N3 = 4173
    logits3 = jax.random.normal(k5, (N3, NUM_CLASSES), dtype=jnp.float32)
    target3 = jax.random.randint(k6, (N3,), 0, NUM_CLASSES, dtype=jnp.int32)
    loss3 = jax.block_until_ready(
        evidential_mse_loss(logits3, target3, batch_count=20000,
                            annealing_step=10000, num_classes=NUM_CLASSES))
    ref3 = jax.block_until_ready(_reference_loss(logits3, target3, 20000, 10000, NUM_CLASSES))

    for got, ref in ((loss1, ref1), (loss2, ref2), (loss3, ref3)):
        assert jnp.isfinite(got), "non-finite loss"
        assert abs(float(got) - float(ref)) <= 2e-3 + 2e-3 * abs(float(ref)), (
            float(got), float(ref))
    print("KERNEL_OK")
</pallas_src>

<mosaic_0001>
module attributes {stable_mosaic.version = 11 : i64} {
  func.func @_evidential_mse_kernel(%arg0: i32, %arg1: memref<1x1xf32, #tpu.memory_space<smem>>, %arg2: memref<10x128xf32, #tpu.memory_space<vmem>>, %arg3: memref<1x128xi32, #tpu.memory_space<vmem>>, %arg4: memref<1x128xf32, #tpu.memory_space<vmem>>) attributes {dimension_semantics = [#tpu.dimension_semantics<parallel>], iteration_bounds = array<i64: 1>, scalar_prefetch = 0 : i64, scratch_operands = 0 : i64, tpu.core_type = #tpu.core_type<tc>, window_params = [{transform_indices = @transform_0, window_bounds = array<i64: 1, 1>}, {transform_indices = @transform_1, window_bounds = array<i64: 10, 128>}, {transform_indices = @transform_2, window_bounds = array<i64: 1, 128>}, {transform_indices = @transform_3, window_bounds = array<i64: 1, 128>}]} {
    %c0 = arith.constant 0 : index
    %c0_0 = arith.constant 0 : index
    %0 = memref.load %arg1[%c0, %c0_0] : memref<1x1xf32, #tpu.memory_space<smem>>
    %c0_i32 = arith.constant 0 : i32
    %c1_i32 = arith.constant 1 : i32
    %1 = arith.muli %c0_i32, %c1_i32 : i32
    %c0_i32_1 = arith.constant 0 : i32
    %2 = arith.addi %c0_i32_1, %1 : i32
    %c128_i32 = arith.constant 128 : i32
    %3 = arith.muli %2, %c128_i32 : i32
    %4 = tpu.assume_multiple %3, 128 : i32
    %c0_2 = arith.constant 0 : index
    %5 = arith.index_cast %4 : i32 to index
    %6 = vector.load %arg2[%c0_2, %5] : memref<10x128xf32, #tpu.memory_space<vmem>>, vector<10x128xf32>
    %c0_3 = arith.constant 0 : index
    %7 = arith.index_cast %4 : i32 to index
    %8 = vector.load %arg3[%c0_3, %7] : memref<1x128xi32, #tpu.memory_space<vmem>>, vector<1x128xi32>
    %9 = tpu.iota {dimensions = array<i32: 0>} : vector<10x128xi32>
    %10 = vector.broadcast %8 : vector<1x128xi32> to vector<10x128xi32>
    %11 = arith.cmpi eq, %9, %10 : vector<10x128xi32>
    %cst = arith.constant 0.000000e+00 : f32
    %12 = vector.broadcast %cst : f32 to vector<10x128xf32>
    %13 = arith.cmpf ogt, %6, %12 : vector<10x128xf32>
    %14 = math.exp %6 : vector<10x128xf32>
    %cst_4 = arith.constant 1.000000e+00 : f32
    %15 = vector.broadcast %cst_4 : f32 to vector<10x128xf32>
    %16 = arith.subf %14, %15 : vector<10x128xf32>
    %17 = arith.select %13, %6, %16 : vector<10x128xi1>, vector<10x128xf32>
    %cst_5 = arith.constant 1.000000e+00 : f32
    %18 = vector.broadcast %cst_5 : f32 to vector<10x128xf32>
    %19 = arith.addf %17, %18 : vector<10x128xf32>
    %cst_6 = arith.constant dense<0.000000e+00> : vector<128xf32>
    %20 = vector.multi_reduction <add>, %19, %cst_6 [0] : vector<10x128xf32> to vector<128xf32>
    %21 = vector.shape_cast %20 : vector<128xf32> to vector<1x128xf32>
    %cst_7 = arith.constant 0.000000e+00 : f32
    %22 = vector.broadcast %cst_7 : f32 to vector<10x128xf32>
    %23 = arith.select %11, %19, %22 : vector<10x128xi1>, vector<10x128xf32>
    %cst_8 = arith.constant dense<0.000000e+00> : vector<128xf32>
    %24 = vector.multi_reduction <add>, %23, %cst_8 [0] : vector<10x128xf32> to vector<128xf32>
    %25 = vector.shape_cast %24 : vector<128xf32> to vector<1x128xf32>
    %26 = arith.mulf %19, %19 : vector<10x128xf32>
    %cst_9 = arith.constant dense<0.000000e+00> : vector<128xf32>
    %27 = vector.multi_reduction <add>, %26, %cst_9 [0] : vector<10x128xf32> to vector<128xf32>
    %28 = vector.shape_cast %27 : vector<128xf32> to vector<1x128xf32>
    %cst_10 = arith.constant 1.000000e+00 : f32
    %29 = vector.broadcast %cst_10 : f32 to vector<1x128xf32>
    %30 = arith.divf %29, %21 : vector<1x128xf32>
    %31 = arith.mulf %30, %30 : vector<1x128xf32>
    %32 = arith.mulf %28, %31 : vector<1x128xf32>
    %cst_11 = arith.constant 2.000000e+00 : f32
    %33 = vector.broadcast %cst_11 : f32 to vector<1x128xf32>
    %34 = arith.mulf %33, %25 : vector<1x128xf32>
    %35 = arith.mulf %34, %30 : vector<1x128xf32>
    %cst_12 = arith.constant 1.000000e+00 : f32
    %36 = vector.broadcast %cst_12 : f32 to vector<1x128xf32>
    %37 = arith.subf %36, %35 : vector<1x128xf32>
    %38 = arith.addf %37, %32 : vector<1x128xf32>
    %cst_13 = arith.constant 1.000000e+00 : f32
    %39 = vector.broadcast %cst_13 : f32 to vector<1x128xf32>
    %40 = arith.subf %39, %32 : vector<1x128xf32>
    %cst_14 = arith.constant 1.000000e+00 : f32
    %41 = vector.broadcast %cst_14 : f32 to vector<1x128xf32>
    %42 = arith.addf %21, %41 : vector<1x128xf32>
    %43 = arith.divf %40, %42 : vector<1x128xf32>
    %44 = arith.addf %38, %43 : vector<1x128xf32>
    %cst_15 = arith.constant 0.000000e+00 : f32
    %45 = vector.broadcast %cst_15 : f32 to vector<10x128xf32>
    %46 = arith.select %11, %45, %17 : vector<10x128xi1>, vector<10x128xf32>
    %cst_16 = arith.constant 1.000000e+00 : f32
    %47 = vector.broadcast %cst_16 : f32 to vector<10x128xf32>
    %48 = arith.addf %46, %47 : vector<10x128xf32>
    %cst_17 = arith.constant 9.99999996E-13 : f32
    %49 = vector.broadcast %cst_17 : f32 to vector<10x128xf32>
    %50 = arith.maximumf %48, %49 : vector<10x128xf32>
    %51 = arith.subf %21, %25 : vector<1x128xf32>
    %cst_18 = arith.constant 1.000000e+00 : f32
    %52 = vector.broadcast %cst_18 : f32 to vector<1x128xf32>
    %53 = arith.addf %51, %52 : vector<1x128xf32>
    %cst_19 = arith.constant 3.000000e+00 : f32
    %54 = vector.broadcast %cst_19 : f32 to vector<10x128xf32>
    %55 = arith.addf %50, %54 : vector<10x128xf32>
    %56 = arith.mulf %50, %55 : vector<10x128xf32>
    %cst_20 = arith.constant 2.000000e+00 : f32
    %57 = vector.broadcast %cst_20 : f32 to vector<10x128xf32>
    %58 = arith.addf %56, %57 : vector<10x128xf32>
    %59 = arith.mulf %56, %58 : vector<10x128xf32>
    %cst_21 = arith.constant 4.000000e+00 : f32
    %60 = vector.broadcast %cst_21 : f32 to vector<10x128xf32>
    %61 = arith.addf %50, %60 : vector<10x128xf32>
    %62 = tpu.reciprocal %61 {approx = true} : vector<10x128xf32> -> vector<10x128xf32>
    %63 = arith.mulf %62, %62 : vector<10x128xf32>
    %64 = math.log %61 : vector<10x128xf32>
    %65 = math.log %59 : vector<10x128xf32>
    %66 = tpu.reciprocal %59 {approx = true} : vector<10x128xf32> -> vector<10x128xf32>
    %67 = arith.mulf %59, %66 : vector<10x128xf32>
    %cst_22 = arith.constant 2.000000e+00 : f32
    %68 = vector.broadcast %cst_22 : f32 to vector<10x128xf32>
    %69 = arith.subf %68, %67 : vector<10x128xf32>
    %70 = arith.mulf %66, %69 : vector<10x128xf32>
    %cst_23 = arith.constant 5.000000e-01 : f32
    %71 = vector.broadcast %cst_23 : f32 to vector<10x128xf32>
    %72 = arith.subf %61, %71 : vector<10x128xf32>
    %73 = arith.mulf %72, %64 : vector<10x128xf32>
    %74 = arith.subf %73, %61 : vector<10x128xf32>
    %cst_24 = arith.constant 0.918938517 : f32
    %75 = vector.broadcast %cst_24 : f32 to vector<10x128xf32>
    %76 = arith.addf %74, %75 : vector<10x128xf32>
    %cst_25 = arith.constant 7.93650805E-4 : f32
    %77 = vector.broadcast %cst_25 : f32 to vector<10x128xf32>
    %78 = arith.mulf %63, %77 : vector<10x128xf32>
    %cst_26 = arith.constant 0.00277777785 : f32
    %79 = vector.broadcast %cst_26 : f32 to vector<10x128xf32>
    %80 = arith.subf %79, %78 : vector<10x128xf32>
    %81 = arith.mulf %63, %80 : vector<10x128xf32>
    %cst_27 = arith.constant 0.0833333358 : f32
    %82 = vector.broadcast %cst_27 : f32 to vector<10x128xf32>
    %83 = arith.subf %82, %81 : vector<10x128xf32>
    %84 = arith.mulf %62, %83 : vector<10x128xf32>
    %85 = arith.addf %76, %84 : vector<10x128xf32>
    %86 = arith.subf %85, %65 : vector<10x128xf32>
    %cst_28 = arith.constant 5.000000e-01 : f32
    %87 = vector.broadcast %cst_28 : f32 to vector<10x128xf32>
    %88 = arith.mulf %87, %62 : vector<10x128xf32>
    %89 = arith.subf %64, %88 : vector<10x128xf32>
    %cst_29 = arith.constant 0.0039682542 : f32
    %90 = vector.broadcast %cst_29 : f32 to vector<10x128xf32>
    %91 = arith.mulf %63, %90 : vector<10x128xf32>
    %cst_30 = arith.constant 0.00833333377 : f32
    %92 = vector.broadcast %cst_30 : f32 to vector<10x128xf32>
    %93 = arith.subf %92, %91 : vector<10x128xf32>
    %94 = arith.mulf %63, %93 : vector<10x128xf32>
    %cst_31 = arith.constant 0.0833333358 : f32
    %95 = vector.broadcast %cst_31 : f32 to vector<10x128xf32>
    %96 = arith.subf %95, %94 : vector<10x128xf32>
    %97 = arith.mulf %63, %96 : vector<10x128xf32>
    %98 = arith.subf %89, %97 : vector<10x128xf32>
    %cst_32 = arith.constant 2.000000e+00 : f32
    %99 = vector.broadcast %cst_32 : f32 to vector<10x128xf32>
    %100 = arith.mulf %99, %56 : vector<10x128xf32>
    %cst_33 = arith.constant 2.000000e+00 : f32
    %101 = vector.broadcast %cst_33 : f32 to vector<10x128xf32>
    %102 = arith.addf %100, %101 : vector<10x128xf32>
    %cst_34 = arith.constant 2.000000e+00 : f32
    %103 = vector.broadcast %cst_34 : f32 to vector<10x128xf32>
    %104 = arith.mulf %103, %50 : vector<10x128xf32>
    %cst_35 = arith.constant 3.000000e+00 : f32
    %105 = vector.broadcast %cst_35 : f32 to vector<10x128xf32>
    %106 = arith.addf %104, %105 : vector<10x128xf32>
    %107 = arith.mulf %102, %106 : vector<10x128xf32>
    %108 = arith.mulf %107, %70 : vector<10x128xf32>
    %109 = arith.subf %98, %108 : vector<10x128xf32>
    %cst_36 = arith.constant 3.000000e+00 : f32
    %110 = vector.broadcast %cst_36 : f32 to vector<1x128xf32>
    %111 = arith.addf %53, %110 : vector<1x128xf32>
    %112 = arith.mulf %53, %111 : vector<1x128xf32>
    %cst_37 = arith.constant 2.000000e+00 : f32
    %113 = vector.broadcast %cst_37 : f32 to vector<1x128xf32>
    %114 = arith.addf %112, %113 : vector<1x128xf32>
    %115 = arith.mulf %112, %114 : vector<1x128xf32>
    %cst_38 = arith.constant 4.000000e+00 : f32
    %116 = vector.broadcast %cst_38 : f32 to vector<1x128xf32>
    %117 = arith.addf %53, %116 : vector<1x128xf32>
    %118 = tpu.reciprocal %117 {approx = true} : vector<1x128xf32> -> vector<1x128xf32>
    %119 = arith.mulf %118, %118 : vector<1x128xf32>
    %120 = math.log %117 : vector<1x128xf32>
    %121 = math.log %115 : vector<1x128xf32>
    %122 = tpu.reciprocal %115 {approx = true} : vector<1x128xf32> -> vector<1x128xf32>
    %123 = arith.mulf %115, %122 : vector<1x128xf32>
    %cst_39 = arith.constant 2.000000e+00 : f32
    %124 = vector.broadcast %cst_39 : f32 to vector<1x128xf32>
    %125 = arith.subf %124, %123 : vector<1x128xf32>
    %126 = arith.mulf %122, %125 : vector<1x128xf32>
    %cst_40 = arith.constant 5.000000e-01 : f32
    %127 = vector.broadcast %cst_40 : f32 to vector<1x128xf32>
    %128 = arith.subf %117, %127 : vector<1x128xf32>
    %129 = arith.mulf %128, %120 : vector<1x128xf32>
    %130 = arith.subf %129, %117 : vector<1x128xf32>
    %cst_41 = arith.constant 0.918938517 : f32
    %131 = vector.broadcast %cst_41 : f32 to vector<1x128xf32>
    %132 = arith.addf %130, %131 : vector<1x128xf32>
    %cst_42 = arith.constant 7.93650805E-4 : f32
    %133 = vector.broadcast %cst_42 : f32 to vector<1x128xf32>
    %134 = arith.mulf %119, %133 : vector<1x128xf32>
    %cst_43 = arith.constant 0.00277777785 : f32
    %135 = vector.broadcast %cst_43 : f32 to vector<1x128xf32>
    %136 = arith.subf %135, %134 : vector<1x128xf32>
    %137 = arith.mulf %119, %136 : vector<1x128xf32>
    %cst_44 = arith.constant 0.0833333358 : f32
    %138 = vector.broadcast %cst_44 : f32 to vector<1x128xf32>
    %139 = arith.subf %138, %137 : vector<1x128xf32>
    %140 = arith.mulf %118, %139 : vector<1x128xf32>
    %141 = arith.addf %132, %140 : vector<1x128xf32>
    %142 = arith.subf %141, %121 : vector<1x128xf32>
    %cst_45 = arith.constant 5.000000e-01 : f32
    %143 = vector.broadcast %cst_45 : f32 to vector<1x128xf32>
    %144 = arith.mulf %143, %118 : vector<1x128xf32>
    %145 = arith.subf %120, %144 : vector<1x128xf32>
    %cst_46 = arith.constant 0.0039682542 : f32
    %146 = vector.broadcast %cst_46 : f32 to vector<1x128xf32>
    %147 = arith.mulf %119, %146 : vector<1x128xf32>
    %cst_47 = arith.constant 0.00833333377 : f32
    %148 = vector.broadcast %cst_47 : f32 to vector<1x128xf32>
    %149 = arith.subf %148, %147 : vector<1x128xf32>
    %150 = arith.mulf %119, %149 : vector<1x128xf32>
    %cst_48 = arith.constant 0.0833333358 : f32
    %151 = vector.broadcast %cst_48 : f32 to vector<1x128xf32>
    %152 = arith.subf %151, %150 : vector<1x128xf32>
    %153 = arith.mulf %119, %152 : vector<1x128xf32>
    %154 = arith.subf %145, %153 : vector<1x128xf32>
    %cst_49 = arith.constant 2.000000e+00 : f32
    %155 = vector.broadcast %cst_49 : f32 to vector<1x128xf32>
    %156 = arith.mulf %155, %112 : vector<1x128xf32>
    %cst_50 = arith.constant 2.000000e+00 : f32
    %157 = vector.broadcast %cst_50 : f32 to vector<1x128xf32>
    %158 = arith.addf %156, %157 : vector<1x128xf32>
    %cst_51 = arith.constant 2.000000e+00 : f32
    %159 = vector.broadcast %cst_51 : f32 to vector<1x128xf32>
    %160 = arith.mulf %159, %53 : vector<1x128xf32>
    %cst_52 = arith.constant 3.000000e+00 : f32
    %161 = vector.broadcast %cst_52 : f32 to vector<1x128xf32>
    %162 = arith.addf %160, %161 : vector<1x128xf32>
    %163 = arith.mulf %158, %162 : vector<1x128xf32>
    %164 = arith.mulf %163, %126 : vector<1x128xf32>
    %165 = arith.subf %154, %164 : vector<1x128xf32>
    %166 = arith.mulf %46, %109 : vector<10x128xf32>
    %cst_53 = arith.constant dense<0.000000e+00> : vector<128xf32>
    %167 = vector.multi_reduction <add>, %166, %cst_53 [0] : vector<10x128xf32> to vector<128xf32>
    %168 = vector.shape_cast %167 : vector<128xf32> to vector<1x128xf32>
    %cst_54 = arith.constant 1.000000e+01 : f32
    %169 = vector.broadcast %cst_54 : f32 to vector<1x128xf32>
    %170 = arith.subf %53, %169 : vector<1x128xf32>
    %171 = arith.mulf %165, %170 : vector<1x128xf32>
    %172 = arith.subf %168, %171 : vector<1x128xf32>
    %173 = arith.addf %172, %142 : vector<1x128xf32>
    %cst_55 = arith.constant dense<0.000000e+00> : vector<128xf32>
    %174 = vector.multi_reduction <add>, %86, %cst_55 [0] : vector<10x128xf32> to vector<128xf32>
    %175 = vector.shape_cast %174 : vector<128xf32> to vector<1x128xf32>
    %176 = arith.subf %173, %175 : vector<1x128xf32>
    %cst_56 = arith.constant -12.8018274 : f32
    %177 = vector.broadcast %cst_56 : f32 to vector<1x128xf32>
    %178 = arith.addf %176, %177 : vector<1x128xf32>
    %179 = vector.broadcast %0 : f32 to vector<1x128xf32>
    %180 = arith.mulf %179, %178 : vector<1x128xf32>
    %181 = arith.addf %44, %180 : vector<1x128xf32>
    %c0_57 = arith.constant 0 : index
    %182 = arith.index_cast %4 : i32 to index
    %183 = vector.load %arg4[%c0_57, %182] : memref<1x128xf32, #tpu.memory_space<vmem>>, vector<1x128xf32>
    tpu.vector_store %arg4[%c0_57, %182], %181 {strides = array<i32>} : memref<1x128xf32, #tpu.memory_space<vmem>>, vector<1x128xf32>,
    %c1_i32_58 = arith.constant 1 : i32
    return
  }
  func.func @transform_0(%arg0: i32) -> (i32, i32) {
    %c0_i32 = arith.constant 0 : i32
    %c0_i32_0 = arith.constant 0 : i32
    %c0_i32_1 = arith.constant 0 : i32
    return %c0_i32, %c0_i32_0 : i32, i32
  }
  func.func @transform_1(%arg0: i32) -> (i32, i32) {
    %c0_i32 = arith.constant 0 : i32
    %c0_i32_0 = arith.constant 0 : i32
    return %c0_i32, %arg0 : i32, i32
  }
  func.func @transform_2(%arg0: i32) -> (i32, i32) {
    %c0_i32 = arith.constant 0 : i32
    %c0_i32_0 = arith.constant 0 : i32
    return %c0_i32, %arg0 : i32, i32
  }
  func.func @transform_3(%arg0: i32) -> (i32, i32) {
    %c0_i32 = arith.constant 0 : i32
    %c0_i32_0 = arith.constant 0 : i32
    return %c0_i32, %arg0 : i32, i32
  }
}

</mosaic_0001>

<llo_original>
// kernel: tpu_custom_call.1
$region0: #{tpu_custom_call.1}
  #allocation0 [shape = 'u32[]', space=smem, size = 0x4, offset = 0x4, fixed_abs, tag = 'smem constant byte address 0x4 - core index']
  #allocation1 [shape = 'u32[144,128]{1,0:T(1,128)}', space=vmem, size = 0x12000, scoped, tag = 'internal scratch']
  #allocation2 [shape = 'f32[1,1]{1,0:T(1,128)S(6)}', space=smem, size = 0x200, scoped, tag = 'scoped memory for tpu_custom_call.1']
  %s0 = inlined_call_operand.<no memory space> [shape: f32[1,1], index: 0, kind: input, shape index: {}]
  %s1 = inlined_call_operand.hbm [shape: f32[10,16], index: 1, kind: input, shape index: {}]
  %s2 = inlined_call_operand.vmem [shape: s32[1,16], index: 2, kind: input, shape index: {}]
  %s3 = inlined_call_operand.hbm [shape: f32[1,16], index: 3, kind: output, shape index: {}]
  %s4 = sld [smem:[#allocation0]]
  $region26: #{tpu_custom_call.1} parent=0
    _
  %s6 = ssub.s32 1, %s4
  %s7 = scalar_select 0, %s6, %s4
  %8 = sst [smem:[#allocation2]] %s0
  $region1: #{tpu_custom_call.1} parent=0
    #allocation3 [shape = 'u8[8192]{0}', space=vmem, size = 0x2000, scoped, tag = 'input window, operand 1, single buffered']
    #allocation4 [shape = 's32[1]{0}', space=sflag, size = 0x4, scoped, tag = 'scoped memory for tpu_custom_call.1']
    #allocation5 [shape = 's32[1]{0}', space=sflag, size = 0x4, scoped, tag = 'scoped memory for tpu_custom_call.1']
    #allocation6 [shape = 'u8[512]{0}', space=vmem, size = 0x400, scoped, tag = 'output window, operand 0, single buffered']
    %9 = vsyncpa [#allocation4], 0
    %10 = vsyncpa [#allocation5], 0
    // Predicated region
    $region2: #{tpu_custom_call.1} parent=1 // pred_check
      _
    $region3: #{tpu_custom_call.1} parent=1 // pred_check_branch
      %12 = sbr.rel (0) target = $region5
    $region4: #{tpu_custom_call.1} parent=1 // pred_region
      _
    $region5: #{tpu_custom_call.1} parent=1 // pred_fallthru
      _
    // Predicated region
    $region6: #{tpu_custom_call.1} parent=1 // pred_check
      _
    $region7: #{tpu_custom_call.1} parent=1 // pred_check_branch
      %14 = sbr.rel (0) target = $region9
    $region8: #{tpu_custom_call.1} parent=1 // pred_region
      %s16 = ssub.s32 256, 256
      %17 = vsyncadd [#allocation4], %s16
      %s18 = sshll.u32 [#allocation3], 4
      %s19 = int_to_ptr.vmem [resolvable:$true] %s18
      %24 = dma.hbm_to_vmem [thread:$0]  %s1, 256, %s19, [#allocation4], 128, 128, 8
    $region9: #{tpu_custom_call.1} parent=1 // pred_fallthru
      _
    // Predicated region
    $region10: #{tpu_custom_call.1} parent=1 // pred_check
      _
    $region11: #{tpu_custom_call.1} parent=1 // pred_check_branch
      %26 = sbr.rel (0) target = $region13
    $region12: #{tpu_custom_call.1} parent=1 // pred_region
      _
    $region13: #{tpu_custom_call.1} parent=1 // pred_fallthru
      _
    // Predicated region
    $region14: #{tpu_custom_call.1} parent=1 // pred_check
      _
    $region15: #{tpu_custom_call.1} parent=1 // pred_check_branch
      %28 = sbr.rel (0) target = $region17
    $region16: #{tpu_custom_call.1} parent=1 // pred_region
      %29 = dma.done [#allocation4], 256
    $region17: #{tpu_custom_call.1} parent=1 // pred_fallthru
      _
    %s30 = sld [smem:[#allocation2]]
    %v31 = vld [vmem:[#allocation3] sm:$0xff]
    %v32 = vld [vmem:[#allocation3 + $0x8] sm:$0x3]
    %v33 = vld [vmem:[%s2] sm:$0x1]
    %v34 = vlaneseq
    %v35 = vshrl.u32 %v34, 7
    %v36 = vadd.s32 %v35, 8
    %v37 = vlaneseq
    %v38 = vshrl.u32 %v37, 7
    %v39 = vsub.s32 0, %v38
    %v40 = vrot.slane %v33, %v39
    %vm41 = vcmp.eq.s32.totalorder %v35, %v40
    %vm42 = vcmp.eq.s32.totalorder %v36, %v40
    %vm43 = vcmp.gt.f32.partialorder %v31, 0.0
    %vm44 = vcmp.gt.f32.partialorder %v32, 0.0
    %v45 = vmul.f32 %v31, 1.442695
    %v46 = vpow.pop %v45
    %v47 = vmul.f32 %v32, 1.442695
    %v48 = vpow.pop %v47
    %v49 = vsub.f32 %v46, 1.0
    %v50 = vsub.f32 %v48, 1.0
    %v51 = vsel %vm43, %v31, %v49
    %v52 = vsel %vm44, %v32, %v50
    %v53 = vadd.f32 %v51, 1.0
    %v54 = vadd.f32 %v52, 1.0
    %vm55 = vcmask 1041408
    %v56 = vsel %vm55, %v54, 0.0
    %v57 = vadd.f32 %v53, %v56
    %v58 = vrot.slane %v57, 4
    %v59 = vadd.f32 %v57, %v58
    %v60 = vrot.slane %v59, 2
    %v61 = vadd.f32 %v59, %v60
    %v62 = vrot.slane %v61, 1
    %v63 = vadd.f32 %v61, %v62
    %v64 = vsel %vm41, %v53, 0.0
    %v65 = vsel %vm42, %v54, 0.0
    %v66 = vsel %vm55, %v65, 0.0
    %v67 = vadd.f32 %v64, %v66
    %v68 = vrot.slane %v67, 4
    %v69 = vadd.f32 %v67, %v68
    %v70 = vrot.slane %v69, 2
    %v71 = vadd.f32 %v69, %v70
    %v72 = vrot.slane %v71, 1
    %v73 = vadd.f32 %v71, %v72
    %v74 = vmul.f32 %v53, %v53
    %v75 = vmul.f32 %v54, %v54
    %v76 = vsel %vm55, %v75, 0.0
    %v77 = vadd.f32 %v74, %v76
    %v78 = vrot.slane %v77, 4
    %v79 = vadd.f32 %v77, %v78
    %v80 = vrot.slane %v79, 2
    %v81 = vadd.f32 %v79, %v80
    %v82 = vrot.slane %v81, 1
    %v83 = vadd.f32 %v81, %v82
    %v84 = vrcp.pop %v63
    %v85 = vmul.f32 1.0, %v84
    %v86 = vmul.f32 %v85, %v85
    %v87 = vmul.f32 %v83, %v86
    %v88 = vmul.f32 %v73, 2.0
    %v89 = vmul.f32 %v88, %v85
    %v90 = vsub.f32 1.0, %v89
    %v91 = vadd.f32 %v90, %v87
    %v92 = vsub.f32 1.0, %v87
    %v93 = vadd.f32 %v63, 1.0
    %v94 = vrcp.pop %v93
    %v95 = vmul.f32 %v92, %v94
    %v96 = vadd.f32 %v91, %v95
    %v97 = vsel %vm41, 0.0, %v51
    %v98 = vsel %vm42, 0.0, %v52
    %v99 = vadd.f32 %v97, 1.0
    %v100 = vadd.f32 %v98, 1.0
    %v101 = vmax.f32 %v99, 1e-12
    %v102 = vmax.f32 %v100, 1e-12
    %v103 = vsub.f32 %v63, %v73
    %v104 = vadd.f32 %v103, 1.0
    %v105 = vadd.f32 %v101, 3.0
    %v106 = vadd.f32 %v102, 3.0
    %v107 = vmul.f32 %v101, %v105
    %v108 = vmul.f32 %v102, %v106
    %v109 = vadd.f32 %v107, 2.0
    %v110 = vadd.f32 %v108, 2.0
    %v111 = vmul.f32 %v107, %v109
    %v112 = vmul.f32 %v108, %v110
    %v113 = vadd.f32 %v101, 4.0
    %v114 = vadd.f32 %v102, 4.0
    %v115 = vrcp.pop %v113
    %v116 = vrcp.pop %v114
    %v117 = vmul.f32 %v115, %v115
    %v118 = vmul.f32 %v116, %v116
    %v119 = vlog2.pop %v113
    %v120 = vmul.f32 %v119, 0.6931472
    %v121 = vlog2.pop %v114
    %v122 = vmul.f32 %v121, 0.6931472
    %v123 = vlog2.pop %v111
    %v124 = vmul.f32 %v123, 0.6931472
    %v125 = vlog2.pop %v112
    %v126 = vmul.f32 %v125, 0.6931472
    %v127 = vrcp.pop %v111
    %v128 = vrcp.pop %v112
    %v129 = vmul.f32 %v111, %v127
    %v130 = vmul.f32 %v112, %v128
    %v131 = vsub.f32 2.0, %v129
    %v132 = vsub.f32 2.0, %v130
    %v133 = vmul.f32 %v127, %v131
    %v134 = vmul.f32 %v128, %v132
    %v135 = vsub.f32 %v113, 0.5
    %v136 = vsub.f32 %v114, 0.5
    %v137 = vmul.f32 %v135, %v120
    %v138 = vmul.f32 %v136, %v122
    %v139 = vsub.f32 %v137, %v113
    %v140 = vsub.f32 %v138, %v114
    %v141 = vadd.f32 %v139, 0.9189385
    %v142 = vadd.f32 %v140, 0.9189385
    %v143 = vmul.f32 %v117, 0.0007936508
    %v144 = vmul.f32 %v118, 0.0007936508
    %v145 = vsub.f32 0.0027777778, %v143
    %v146 = vsub.f32 0.0027777778, %v144
    %v147 = vmul.f32 %v117, %v145
    %v148 = vmul.f32 %v118, %v146
    %v149 = vsub.f32 0.083333336, %v147
    %v150 = vsub.f32 0.083333336, %v148
    %v151 = vmul.f32 %v115, %v149
    %v152 = vmul.f32 %v116, %v150
    %v153 = vadd.f32 %v141, %v151
    %v154 = vadd.f32 %v142, %v152
    %v155 = vsub.f32 %v153, %v124
    %v156 = vsub.f32 %v154, %v126
    %v157 = vmul.f32 %v115, 0.5
    %v158 = vmul.f32 %v116, 0.5
    %v159 = vsub.f32 %v120, %v157
    %v160 = vsub.f32 %v122, %v158
    %v161 = vmul.f32 %v117, 0.003968254
    %v162 = vmul.f32 %v118, 0.003968254
    %v163 = vsub.f32 0.008333334, %v161
    %v164 = vsub.f32 0.008333334, %v162
    %v165 = vmul.f32 %v117, %v163
    %v166 = vmul.f32 %v118, %v164
    %v167 = vsub.f32 0.083333336, %v165
    %v168 = vsub.f32 0.083333336, %v166
    %v169 = vmul.f32 %v117, %v167
    %v170 = vmul.f32 %v118, %v168
    %v171 = vsub.f32 %v159, %v169
    %v172 = vsub.f32 %v160, %v170
    %v173 = vmul.f32 %v107, 2.0
    %v174 = vmul.f32 %v108, 2.0
    %v175 = vadd.f32 %v173, 2.0
    %v176 = vadd.f32 %v174, 2.0
    %v177 = vmul.f32 %v101, 2.0
    %v178 = vmul.f32 %v102, 2.0
    %v179 = vadd.f32 %v177, 3.0
    %v180 = vadd.f32 %v178, 3.0
    %v181 = vmul.f32 %v175, %v179
    %v182 = vmul.f32 %v176, %v180
    %v183 = vmul.f32 %v181, %v133
    %v184 = vmul.f32 %v182, %v134
    %v185 = vsub.f32 %v171, %v183
    %v186 = vsub.f32 %v172, %v184
    %v187 = vadd.f32 %v104, 3.0
    %v188 = vmul.f32 %v104, %v187
    %v189 = vadd.f32 %v188, 2.0
    %v190 = vmul.f32 %v188, %v189
    %v191 = vadd.f32 %v104, 4.0
    %v192 = vrcp.pop %v191
    %v193 = vmul.f32 %v192, %v192
    %v194 = vlog2.pop %v191
    %v195 = vmul.f32 %v194, 0.6931472
    %v196 = vlog2.pop %v190
    %v197 = vmul.f32 %v196, 0.6931472
    %v198 = vrcp.pop %v190
    %v199 = vmul.f32 %v190, %v198
    %v200 = vsub.f32 2.0, %v199
    %v201 = vmul.f32 %v198, %v200
    %v202 = vsub.f32 %v191, 0.5
    %v203 = vmul.f32 %v202, %v195
    %v204 = vsub.f32 %v203, %v191
    %v205 = vadd.f32 %v204, 0.9189385
    %v206 = vmul.f32 %v193, 0.0007936508
    %v207 = vsub.f32 0.0027777778, %v206
    %v208 = vmul.f32 %v193, %v207
    %v209 = vsub.f32 0.083333336, %v208
    %v210 = vmul.f32 %v192, %v209
    %v211 = vadd.f32 %v205, %v210
    %v212 = vsub.f32 %v211, %v197
    %v213 = vmul.f32 %v192, 0.5
    %v214 = vsub.f32 %v195, %v213
    %v215 = vmul.f32 %v193, 0.003968254
    %v216 = vsub.f32 0.008333334, %v215
    %v217 = vmul.f32 %v193, %v216
    %v218 = vsub.f32 0.083333336, %v217
    %v219 = vmul.f32 %v193, %v218
    %v220 = vsub.f32 %v214, %v219
    %v221 = vmul.f32 %v188, 2.0
    %v222 = vadd.f32 %v221, 2.0
    %v223 = vmul.f32 %v104, 2.0
    %v224 = vadd.f32 %v223, 3.0
    %v225 = vmul.f32 %v222, %v224
    %v226 = vmul.f32 %v225, %v201
    %v227 = vsub.f32 %v220, %v226
    %v228 = vmul.f32 %v97, %v185
    %v229 = vmul.f32 %v98, %v186
    %v230 = vsel %vm55, %v229, 0.0
    %v231 = vadd.f32 %v228, %v230
    %v232 = vrot.slane %v231, 4
    %v233 = vadd.f32 %v231, %v232
    %v234 = vrot.slane %v233, 2
    %v235 = vadd.f32 %v233, %v234
    %v236 = vrot.slane %v235, 1
    %v237 = vadd.f32 %v235, %v236
    %v238 = vsub.f32 %v104, 10.0
    %v239 = vmul.f32 %v227, %v238
    %v240 = vsub.f32 %v237, %v239
    %v241 = vadd.f32 %v240, %v212
    %v242 = vsel %vm55, %v156, 0.0
    %v243 = vadd.f32 %v155, %v242
    %v244 = vrot.slane %v243, 4
    %v245 = vadd.f32 %v243, %v244
    %v246 = vrot.slane %v245, 2
    %v247 = vadd.f32 %v245, %v246
    %v248 = vrot.slane %v247, 1
    %v249 = vadd.f32 %v247, %v248
    %v250 = vsub.f32 %v241, %v249
    %v251 = vadd.f32 %v250, -12.801827
    %v252 = vstv %s30
    %v253 = vmul.f32 %v252, %v251
    %v254 = vadd.f32 %v96, %v253
    %255 = vst [vmem:[#allocation6] sm:$0x1] %v254
    // Predicated region
    $region18: #{tpu_custom_call.1} parent=1 // pred_check
      _
    $region19: #{tpu_custom_call.1} parent=1 // pred_check_branch
      %257 = sbr.rel (0) target = $region21
    $region20: #{tpu_custom_call.1} parent=1 // pred_region
      %s259 = ssub.s32 16, 16
      %260 = vsyncadd [#allocation5], %s259
      %s262 = sshll.u32 [#allocation6], 4
      %s263 = int_to_ptr.vmem [resolvable:$true] %s262
      %265 = dma.vmem_to_hbm [thread:$0]  %s263, 16, %s3, [#allocation5]
    $region21: #{tpu_custom_call.1} parent=1 // pred_fallthru
      _
    // Predicated region
    $region22: #{tpu_custom_call.1} parent=1 // pred_check
      _
    $region23: #{tpu_custom_call.1} parent=1 // pred_check_branch
      %267 = sbr.rel (0) target = $region25
    $region24: #{tpu_custom_call.1} parent=1 // pred_region
      %268 = dma.done [#allocation5], 16
    $region25: #{tpu_custom_call.1} parent=1 // pred_fallthru
      _
    %269 = vsyncpa [#allocation4], 1
    %270 = vsyncpa [#allocation5], 1

</llo_original>
